<compile_context>
chip_gen: v7x
topology: tpu7x:2x2x1
jax: 0.10.0
libtpu: 0.0.40
codegen_flags: <defaults>
</compile_context>

<pallas_src>
import jax
import jax.numpy as jnp
from jax import lax
from jax.experimental import pallas as pl
from jax.experimental.pallas import tpu as pltpu

VOTE_DIM = 4  # votes carry 4 channels (the Linear input is feat_dim + 4)


def _clustering_kernel(x_ref, w_ref, b_ref, out_ref, alpha_ref):
    x = x_ref[0]            # (N, D)  with D = F + 4, votes in columns [0:4)
    w = w_ref[...]          # (D, K)
    bias = b_ref[...]       # (1, K) f32

    # logits = [votes|feats] @ W.T + b in a single MXU matmul, f32 accumulate.
    logits = jnp.dot(x, w, preferred_element_type=jnp.float32) + bias   # (N, K)

    # Softmax over the points axis (torch dim=1), kept in f32.
    m = jnp.max(logits, axis=0, keepdims=True)            # (1, K)
    e = jnp.exp(logits - m)                                # (N, K) — EUP
    s = jnp.sum(e, axis=0, keepdims=True)                  # (1, K)
    alpha = e * (1.0 / s)                                  # exact recip on 1 row,
    alpha_ref[0] = alpha.astype(alpha_ref.dtype)           # then broadcast mul

    # sum_n alpha == 1 exactly, so the per-cluster normalization collapses to
    # the constant 1/(1+1e-6) applied to the tiny (K, D) result (no (N, K)
    # divide, no (1, K) sublane reduction).
    scale = jnp.float32(1.0 / (1.0 + 1e-6))
    red = lax.dot_general(alpha.astype(x.dtype), x, (((0,), (0,)), ((), ())),
                          preferred_element_type=jnp.float32) * scale   # (K, D)
    out_ref[0] = red.astype(out_ref.dtype)


def differentiable_clustering(votes, features, params):
    """Pallas implementation of DifferentiableClustering.forward."""
    B, N, dv = votes.shape
    _, _, F = features.shape
    K = params["w"].shape[0]
    assert dv == VOTE_DIM
    assert params["w"].shape[1] == F + VOTE_DIM
    D = F + VOTE_DIM

    # Dtype-preserving: keep MXU operands / alpha writeback in the caller's
    # dtype (bf16 stays bf16 on v6e/v7x); accumulation is f32 in-kernel.
    compute_dtype = jnp.result_type(votes.dtype, features.dtype)

    # Merge votes into the feature operand (concat order matches the module:
    # [votes, features]); split the Linear weight the same way by transposing.
    x = jnp.concatenate(
        [votes.astype(compute_dtype), features.astype(compute_dtype)], axis=-1)
    w = params["w"].T.astype(compute_dtype)               # (D, K)
    b = params["b"].reshape(1, K).astype(jnp.float32)     # (1, K)

    out_shape = (
        jax.ShapeDtypeStruct((B, K, D), compute_dtype),   # [mu | h_k] combined
        jax.ShapeDtypeStruct((B, N, K), compute_dtype),   # alpha
    )

    grid_spec = pltpu.PrefetchScalarGridSpec(
        num_scalar_prefetch=0,
        grid=(B,),
        in_specs=[
            pl.BlockSpec((1, N, D), lambda i: (i, 0, 0)),
            pl.BlockSpec((D, K), lambda i: (0, 0)),        # resident weight
            pl.BlockSpec((1, K), lambda i: (0, 0)),        # resident bias
        ],
        out_specs=(
            pl.BlockSpec((1, K, D), lambda i: (i, 0, 0)),
            pl.BlockSpec((1, N, K), lambda i: (i, 0, 0)),
        ),
    )

    out, alpha = pl.pallas_call(
        _clustering_kernel,
        out_shape=out_shape,
        grid_spec=grid_spec,
        compiler_params=pltpu.CompilerParams(
            dimension_semantics=("parallel",)),
    )(x, w, b)

    mu = out[:, :, :VOTE_DIM]     # (B, K, 4)
    h_k = out[:, :, VOTE_DIM:]    # (B, K, F)
    return mu, h_k, alpha


def _reference(votes, features, params):
    x = jnp.concatenate([votes, features], axis=-1)
    logits = x @ params["w"].T + params["b"]
    alpha = jax.nn.softmax(logits, axis=1)
    denom = alpha.sum(axis=1) + 1e-6                              # (B, K)
    mu = jnp.einsum('bnk,bnc->bkc', alpha, votes) / denom[..., None]
    h_k = jnp.einsum('bnk,bnf->bkf', alpha, features) / denom[..., None]
    return mu, h_k, alpha


if __name__ == "__main__":
    key = jax.random.PRNGKey(0)
    kv, kf, kw, kb = jax.random.split(key, 4)

    B, N, FEAT, K = 2, 256, 32, 128                 # num_clusters default = 128
    votes = jax.random.normal(kv, (B, N, VOTE_DIM), jnp.float32)
    features = jax.random.normal(kf, (B, N, FEAT), jnp.float32)
    bound = (FEAT + VOTE_DIM) ** -0.5               # nn.Linear-style init
    params = {
        "w": jax.random.uniform(kw, (K, FEAT + VOTE_DIM), jnp.float32, -bound, bound),
        "b": jax.random.uniform(kb, (K,), jnp.float32, -bound, bound),
    }

    mu, h_k, alpha = differentiable_clustering(votes, features, params)
    jax.block_until_ready((mu, h_k, alpha))

    mu_r, hk_r, alpha_r = _reference(votes, features, params)
    assert mu.shape == (B, K, VOTE_DIM), mu.shape
    assert h_k.shape == (B, K, FEAT), h_k.shape
    assert alpha.shape == (B, N, K), alpha.shape
    assert jnp.allclose(alpha, alpha_r, atol=1e-5, rtol=1e-4), "alpha mismatch"
    assert jnp.allclose(mu, mu_r, atol=1e-4, rtol=1e-4), "mu mismatch"
    assert jnp.allclose(h_k, hk_r, atol=1e-4, rtol=1e-4), "h_k mismatch"

    print("KERNEL_OK")
</pallas_src>

<mosaic_0001>
module attributes {stable_mosaic.version = 11 : i64} {
  func.func @_clustering_kernel(%arg0: i32, %arg1: memref<1x256x36xf32, #tpu.memory_space<vmem>>, %arg2: memref<36x128xf32, #tpu.memory_space<vmem>>, %arg3: memref<1x128xf32, #tpu.memory_space<vmem>>, %arg4: memref<1x128x36xf32, #tpu.memory_space<vmem>>, %arg5: memref<1x256x128xf32, #tpu.memory_space<vmem>>) attributes {dimension_semantics = [#tpu.dimension_semantics<parallel>], iteration_bounds = array<i64: 2>, scalar_prefetch = 0 : i64, scratch_operands = 0 : i64, tpu.core_type = #tpu.core_type<tc>, window_params = [{transform_indices = @transform_0, window_bounds = array<i64: 1, 256, 36>}, {pipeline_mode = #tpu.pipeline_mode<synchronous>, transform_indices = @transform_1, window_bounds = array<i64: 36, 128>}, {pipeline_mode = #tpu.pipeline_mode<synchronous>, transform_indices = @transform_2, window_bounds = array<i64: 1, 128>}, {transform_indices = @transform_3, window_bounds = array<i64: 1, 128, 36>}, {transform_indices = @transform_4, window_bounds = array<i64: 1, 256, 128>}]} {
    %c0 = arith.constant 0 : index
    %c0_0 = arith.constant 0 : index
    %c0_1 = arith.constant 0 : index
    %0 = vector.load %arg1[%c0, %c0_0, %c0_1] : memref<1x256x36xf32, #tpu.memory_space<vmem>>, vector<1x256x36xf32>
    %1 = vector.shape_cast %0 : vector<1x256x36xf32> to vector<256x36xf32>
    %c0_2 = arith.constant 0 : index
    %c0_3 = arith.constant 0 : index
    %2 = vector.load %arg2[%c0_2, %c0_3] : memref<36x128xf32, #tpu.memory_space<vmem>>, vector<36x128xf32>
    %c0_4 = arith.constant 0 : index
    %c0_5 = arith.constant 0 : index
    %3 = vector.load %arg3[%c0_4, %c0_5] : memref<1x128xf32, #tpu.memory_space<vmem>>, vector<1x128xf32>
    %cst = arith.constant dense<0.000000e+00> : vector<256x128xf32>
    %4 = tpu.matmul %1, %2, %cst {dimension_numbers = #tpu.dot_dimension_numbers<[1], [0], [0], [1], [0, 0, 1, 1], [], []>} : vector<256x36xf32>, vector<36x128xf32>, vector<256x128xf32> -> vector<256x128xf32>
    %5 = vector.broadcast %3 : vector<1x128xf32> to vector<256x128xf32>
    %6 = arith.addf %4, %5 : vector<256x128xf32>
    %cst_6 = arith.constant dense<0xFF800000> : vector<128xf32>
    %7 = vector.multi_reduction <maximumf>, %6, %cst_6 [0] : vector<256x128xf32> to vector<128xf32>
    %8 = vector.shape_cast %7 : vector<128xf32> to vector<1x128xf32>
    %9 = vector.broadcast %8 : vector<1x128xf32> to vector<256x128xf32>
    %10 = arith.subf %6, %9 : vector<256x128xf32>
    %11 = math.exp %10 : vector<256x128xf32>
    %cst_7 = arith.constant dense<0.000000e+00> : vector<128xf32>
    %12 = vector.multi_reduction <add>, %11, %cst_7 [0] : vector<256x128xf32> to vector<128xf32>
    %13 = vector.shape_cast %12 : vector<128xf32> to vector<1x128xf32>
    %cst_8 = arith.constant 1.000000e+00 : f32
    %14 = vector.broadcast %cst_8 : f32 to vector<1x128xf32>
    %15 = arith.divf %14, %13 : vector<1x128xf32>
    %16 = vector.broadcast %15 : vector<1x128xf32> to vector<256x128xf32>
    %17 = arith.mulf %11, %16 : vector<256x128xf32>
    %c0_9 = arith.constant 0 : index
    %c0_10 = arith.constant 0 : index
    %c0_11 = arith.constant 0 : index
    %18 = vector.load %arg5[%c0_9, %c0_10, %c0_11] : memref<1x256x128xf32, #tpu.memory_space<vmem>>, vector<1x256x128xf32>
    %19 = vector.shape_cast %18 : vector<1x256x128xf32> to vector<256x128xf32>
    %20 = vector.shape_cast %17 : vector<256x128xf32> to vector<1x256x128xf32>
    tpu.vector_store %arg5[%c0_9, %c0_10, %c0_11], %20 {strides = array<i32>} : memref<1x256x128xf32, #tpu.memory_space<vmem>>, vector<1x256x128xf32>,
    %cst_12 = arith.constant dense<0.000000e+00> : vector<128x36xf32>
    %21 = tpu.matmul %17, %1, %cst_12 {dimension_numbers = #tpu.dot_dimension_numbers<[0], [0], [1], [1], [0, 1, 1, 1], [], []>} : vector<256x128xf32>, vector<256x36xf32>, vector<128x36xf32> -> vector<128x36xf32>
    %cst_13 = arith.constant 0.999998986 : f32
    %22 = vector.broadcast %cst_13 : f32 to vector<128x36xf32>
    %23 = arith.mulf %21, %22 : vector<128x36xf32>
    %c0_14 = arith.constant 0 : index
    %c0_15 = arith.constant 0 : index
    %c0_16 = arith.constant 0 : index
    %24 = vector.load %arg4[%c0_14, %c0_15, %c0_16] : memref<1x128x36xf32, #tpu.memory_space<vmem>>, vector<1x128x36xf32>
    %25 = vector.shape_cast %24 : vector<1x128x36xf32> to vector<128x36xf32>
    %26 = vector.shape_cast %23 : vector<128x36xf32> to vector<1x128x36xf32>
    tpu.vector_store %arg4[%c0_14, %c0_15, %c0_16], %26 {strides = array<i32>} : memref<1x128x36xf32, #tpu.memory_space<vmem>>, vector<1x128x36xf32>,
    return
  }
  func.func @transform_0(%arg0: i32) -> (i32, i32, i32) {
    %c0_i32 = arith.constant 0 : i32
    %c0_i32_0 = arith.constant 0 : i32
    %c0_i32_1 = arith.constant 0 : i32
    return %arg0, %c0_i32, %c0_i32_0 : i32, i32, i32
  }
  func.func @transform_1(%arg0: i32) -> (i32, i32) {
    %c0_i32 = arith.constant 0 : i32
    %c0_i32_0 = arith.constant 0 : i32
    %c0_i32_1 = arith.constant 0 : i32
    return %c0_i32, %c0_i32_0 : i32, i32
  }
  func.func @transform_2(%arg0: i32) -> (i32, i32) {
    %c0_i32 = arith.constant 0 : i32
    %c0_i32_0 = arith.constant 0 : i32
    %c0_i32_1 = arith.constant 0 : i32
    return %c0_i32, %c0_i32_0 : i32, i32
  }
  func.func @transform_3(%arg0: i32) -> (i32, i32, i32) {
    %c0_i32 = arith.constant 0 : i32
    %c0_i32_0 = arith.constant 0 : i32
    %c0_i32_1 = arith.constant 0 : i32
    return %arg0, %c0_i32, %c0_i32_0 : i32, i32, i32
  }
  func.func @transform_4(%arg0: i32) -> (i32, i32, i32) {
    %c0_i32 = arith.constant 0 : i32
    %c0_i32_0 = arith.constant 0 : i32
    %c0_i32_1 = arith.constant 0 : i32
    return %arg0, %c0_i32, %c0_i32_0 : i32, i32, i32
  }
}

</mosaic_0001>

<llo_original>
// kernel: tpu_custom_call.1
$region0: #{tpu_custom_call.1}
  #allocation0 [shape = 'u32[]', space=smem, size = 0x4, offset = 0x4, fixed_abs, tag = 'smem constant byte address 0x4 - core index']
  #allocation1 [shape = 'u32[144,128]{1,0:T(1,128)}', space=vmem, size = 0x12000, scoped, tag = 'internal scratch']
  %s0 = inlined_call_operand.vmem [shape: f32[2,256,36], index: 0, kind: input, shape index: {}]
  %s1 = inlined_call_operand.vmem [shape: f32[36,128], index: 1, kind: input, shape index: {}]
  %s2 = inlined_call_operand.vmem [shape: f32[1,128], index: 2, kind: input, shape index: {}]
  %s3 = inlined_call_operand.vmem [shape: f32[2,128,36], index: 3, kind: output, shape index: {0}]
  %s4 = inlined_call_operand.hbm [shape: f32[2,256,128], index: 4, kind: output, shape index: {1}]
  %5 = xla_tuple %s3, %s4
  %s6 = sld [smem:[#allocation0]]
  $region53: #{tpu_custom_call.1} parent=0
    _
  %s8 = ssub.s32 1, %s6
  %s9 = scalar_select 0, %s8, %s6
  $region1: #{tpu_custom_call.1} parent=0
    #allocation2 [shape = 'u8[262144]{0}', space=vmem, size = 0x40000, scoped, tag = 'output window, operand 1']
    #allocation3 [shape = 's32[2]{0}', space=sflag, size = 0x8, scoped, tag = 'scoped memory for tpu_custom_call.1']
    %10 = vsyncpa [#allocation3], 0
    %s11 = scalar_lea.sflag [#allocation3], 1
    %12 = vsyncpa %s11, 0
    loop: start=0, step=1, limit=4
    $region2: #{tpu_custom_call.1} parent=1 // loop_pre_header
      _
    $region3: #{tpu_custom_call.1} parent=1 // loop_header
      %s14 = sphi 0, %s18
      %p15 = scmp.ge.s32.totalorder %s14, 4
      %s24 = sphi 0, %s26
      %s27 = sphi 0, %s24
      %s28 = sphi 0, %s27
      %s44 = sphi 0, %s28
      %s48 = sphi 0, %s48
      %s50 = sphi 0, %s48
      %s51 = sphi 0, %s50
      %s65 = sphi 0, %s51
      %s69 = sphi 0, %s69
      %s71 = sphi 0, %s69
      %s72 = sphi 0, %s71
      %s86 = sphi 0, %s72
      %s92 = sphi 0, %s94
      %s95 = sphi 0, %s92
      %s96 = sphi 0, %s95
      %s112 = sphi 0, %s96
      %s118 = sphi 0, %s120
      %s121 = sphi 0, %s118
      %s122 = sphi 0, %s121
      %s138 = sphi 0, %s122
    $region4: #{tpu_custom_call.1} parent=1 // loop_header_branch
      %17 = sbr.rel (%p15) target = $region8
    $region5: #{tpu_custom_call.1} parent=1 // loop_body
      %s19 = ssub.s32 %s14, 1
      %s20 = ssub.s32 %s14, 2
      %s21 = sadd.s32 %s14, 1
      %s22 = ssub.s32 %s14, %s21
      %p23 = scmp.eq.s32.totalorder %s22, 0
      %s25 = sadd.s32 %s24, 1
      %s26 = scalar_select %p23, %s24, %s25
      %p29 = pneg %p23
      %p30 = scmp.eq.s32.totalorder %s14, 1
      %p31 = por %p29, %p30
      %p32 = scmp.ne.s32.totalorder %s24, %s27
      %p33 = scmp.eq.s32.totalorder %s14, 0
      %p34 = por %p32, %p33
      %p35 = scmp.ne.s32.totalorder %s24, %s27
      %p36 = scmp.eq.s32.totalorder %s19, 1
      %p37 = por %p35, %p36
      %p38 = scmp.ne.s32.totalorder %s27, %s28
      %p39 = scmp.eq.s32.totalorder %s19, 0
      %p40 = por %p38, %p39
      %p41 = scmp.ne.s32.totalorder %s27, %s28
      %p42 = scmp.eq.s32.totalorder %s20, 1
      %p43 = por %p41, %p42
      %p45 = scmp.ne.s32.totalorder %s28, %s44
      %p46 = scmp.eq.s32.totalorder %s20, 0
      %p47 = por %p45, %p46
      %s49 = sadd.s32 %s48, 1
      %p52 = scmp.eq.s32.totalorder %s14, 1
      %p53 = scmp.ne.s32.totalorder %s48, %s50
      %p54 = scmp.eq.s32.totalorder %s14, 0
      %p55 = por %p53, %p54
      %p56 = scmp.ne.s32.totalorder %s48, %s50
      %p57 = scmp.eq.s32.totalorder %s19, 1
      %p58 = por %p56, %p57
      %p59 = scmp.ne.s32.totalorder %s50, %s51
      %p60 = scmp.eq.s32.totalorder %s19, 0
      %p61 = por %p59, %p60
      %p62 = scmp.ne.s32.totalorder %s50, %s51
      %p63 = scmp.eq.s32.totalorder %s20, 1
      %p64 = por %p62, %p63
      %p66 = scmp.ne.s32.totalorder %s51, %s65
      %p67 = scmp.eq.s32.totalorder %s20, 0
      %p68 = por %p66, %p67
      %s70 = sadd.s32 %s69, 1
      %p73 = scmp.eq.s32.totalorder %s14, 1
      %p74 = scmp.ne.s32.totalorder %s69, %s71
      %p75 = scmp.eq.s32.totalorder %s14, 0
      %p76 = por %p74, %p75
      %p77 = scmp.ne.s32.totalorder %s69, %s71
      %p78 = scmp.eq.s32.totalorder %s19, 1
      %p79 = por %p77, %p78
      %p80 = scmp.ne.s32.totalorder %s71, %s72
      %p81 = scmp.eq.s32.totalorder %s19, 0
      %p82 = por %p80, %p81
      %p83 = scmp.ne.s32.totalorder %s71, %s72
      %p84 = scmp.eq.s32.totalorder %s20, 1
      %p85 = por %p83, %p84
      %p87 = scmp.ne.s32.totalorder %s72, %s86
      %p88 = scmp.eq.s32.totalorder %s20, 0
      %p89 = por %p87, %p88
      %s90 = ssub.s32 %s14, %s21
      %p91 = scmp.eq.s32.totalorder %s90, 0
      %s93 = sadd.s32 %s92, 1
      %s94 = scalar_select %p91, %s92, %s93
      %p97 = pneg %p91
      %p98 = scmp.eq.s32.totalorder %s14, 1
      %p99 = por %p97, %p98
      %p100 = scmp.ne.s32.totalorder %s92, %s95
      %p101 = scmp.eq.s32.totalorder %s14, 0
      %p102 = por %p100, %p101
      %p103 = scmp.ne.s32.totalorder %s92, %s95
      %p104 = scmp.eq.s32.totalorder %s19, 1
      %p105 = por %p103, %p104
      %p106 = scmp.ne.s32.totalorder %s95, %s96
      %p107 = scmp.eq.s32.totalorder %s19, 0
      %p108 = por %p106, %p107
      %p109 = scmp.ne.s32.totalorder %s95, %s96
      %p110 = scmp.eq.s32.totalorder %s20, 1
      %p111 = por %p109, %p110
      %p113 = scmp.ne.s32.totalorder %s96, %s112
      %p114 = scmp.eq.s32.totalorder %s20, 0
      %p115 = por %p113, %p114
      %s116 = ssub.s32 %s14, %s21
      %p117 = scmp.eq.s32.totalorder %s116, 0
      %s119 = sadd.s32 %s118, 1
      %s120 = scalar_select %p117, %s118, %s119
      %p123 = pneg %p117
      %p124 = scmp.eq.s32.totalorder %s14, 1
      %p125 = por %p123, %p124
      %p126 = scmp.ne.s32.totalorder %s118, %s121
      %p127 = scmp.eq.s32.totalorder %s14, 0
      %p128 = por %p126, %p127
      %p129 = scmp.ne.s32.totalorder %s118, %s121
      %p130 = scmp.eq.s32.totalorder %s19, 1
      %p131 = por %p129, %p130
      %p132 = scmp.ne.s32.totalorder %s121, %s122
      %p133 = scmp.eq.s32.totalorder %s19, 0
      %p134 = por %p132, %p133
      %p135 = scmp.ne.s32.totalorder %s121, %s122
      %p136 = scmp.eq.s32.totalorder %s20, 1
      %p137 = por %p135, %p136
      %p139 = scmp.ne.s32.totalorder %s122, %s138
      %p140 = scmp.eq.s32.totalorder %s20, 0
      %p141 = por %p139, %p140
      %p142 = scmp.le.s32.totalorder 1, %s14
      %p143 = scmp.lt.s32.totalorder %s14, 3
      %p144 = pnand %p142, %p143
      %p145 = pneg %p144
      // Predicated region
      $region9: #{tpu_custom_call.1} parent=5 // pred_check
        _
      $region10: #{tpu_custom_call.1} parent=5 // pred_check_branch
        %147 = sbr.rel (%p144) target = $region12
      $region11: #{tpu_custom_call.1} parent=5 // pred_region
        %s148 = ssub.s32 %s14, 1
        // Predicated region
        $region13: #{tpu_custom_call.1} parent=11 // pred_check
          %p149 = pneg %p61
        $region14: #{tpu_custom_call.1} parent=11 // pred_check_branch
          %151 = sbr.rel (%p149) target = $region16
        $region15: #{tpu_custom_call.1} parent=11 // pred_region
          _
        $region16: #{tpu_custom_call.1} parent=11 // pred_fallthru
          _
        // Predicated region
        $region17: #{tpu_custom_call.1} parent=11 // pred_check
          %p152 = pneg %p82
        $region18: #{tpu_custom_call.1} parent=11 // pred_check_branch
          %154 = sbr.rel (%p152) target = $region20
        $region19: #{tpu_custom_call.1} parent=11 // pred_region
          _
        $region20: #{tpu_custom_call.1} parent=11 // pred_fallthru
          _
      $region12: #{tpu_custom_call.1} parent=5 // pred_fallthru
        _
      %p155 = scmp.lt.s32.totalorder %s14, 2
      // Predicated region
      $region21: #{tpu_custom_call.1} parent=5 // pred_check
        %p156 = pneg %p155
      $region22: #{tpu_custom_call.1} parent=5 // pred_check_branch
        %158 = sbr.rel (%p156) target = $region24
      $region23: #{tpu_custom_call.1} parent=5 // pred_region
        // Predicated region
        $region25: #{tpu_custom_call.1} parent=23 // pred_check
          %p159 = pneg %p34
        $region26: #{tpu_custom_call.1} parent=23 // pred_check_branch
          %161 = sbr.rel (%p159) target = $region28
        $region27: #{tpu_custom_call.1} parent=23 // pred_region
          %p162 = scmp.lt.s32.totalorder %s14, 1
          %s163 = scalar_select %p162, %s14, 1
          %s164 = smul.addr %s163, 32
          %s165 = smul.addr %s164, 8
          %s166 = scalar_lea.vmem %s0, %s165
        $region28: #{tpu_custom_call.1} parent=23 // pred_fallthru
          _
      $region24: #{tpu_custom_call.1} parent=5 // pred_fallthru
        _
      %p167 = scmp.le.s32.totalorder 1, %s14
      %p168 = scmp.lt.s32.totalorder %s14, 3
      %p169 = pnand %p167, %p168
      %p170 = pneg %p169
      // Predicated region
      $region29: #{tpu_custom_call.1} parent=5 // pred_check
        _
      $region30: #{tpu_custom_call.1} parent=5 // pred_check_branch
        %172 = sbr.rel (%p169) target = $region32
      $region31: #{tpu_custom_call.1} parent=5 // pred_region
        %s173 = ssub.s32 %s14, 1
        %p174 = scmp.lt.s32.totalorder %s19, 1
        %s175 = scalar_select %p174, %s19, 1
        %s176 = smul.addr %s175, 32
        %s177 = smul.addr %s176, 8
        %s178 = scalar_lea.vmem %s0, %s177
        %p179 = pneg %p40
        %p180 = pneg %p37
        %p181 = pneg %p61
        %p182 = pneg %p58
        %p183 = pneg %p82
        %p184 = pneg %p79
        %p185 = pneg %p108
        %p186 = pneg %p105
        %p187 = scmp.lt.s32.totalorder %s19, 1
        %s188 = scalar_select %p187, %s19, 1
        %s189 = smul.addr %s188, 16
        %s190 = smul.addr %s189, 8
        %s191 = scalar_lea.vmem %s3, %s190
        %p192 = pneg %p134
        %p193 = pneg %p131
        %s194 = sand.u32 %s121, 1
        %s195 = scalar_lea.sflag [#allocation3], %s194
        %s196 = sand.u32 %s121, 1
        %s197 = smul.addr %s196, 256
        %s198 = scalar_lea.vmem [#allocation2], %s197
        %p199 = scmp.lt.s32.totalorder %s19, 1
        %s200 = scalar_select %p199, %s19, 1
        %s201 = smul.addr %s200, 32
        %s202 = smul.addr %s201, 8
        %s203 = scalar_lea.vmem %s0, %s202
        %p204 = scmp.lt.s32.totalorder %s19, 1
        %s205 = scalar_select %p204, %s19, 1
        %s206 = smul.addr %s205, 16
        %s207 = smul.addr %s206, 8
        %s208 = scalar_lea.vmem %s3, %s207
        %v209 = vld [vmem:[%s203] sm:$0xff]
        %v210 = vld [vmem:[%s203 + $0x8] sm:$0xff]
        %v211 = vld [vmem:[%s203 + $0x10] sm:$0xff]
        %v212 = vld [vmem:[%s203 + $0x18] sm:$0xff]
        %v213 = vld [vmem:[%s203 + $0x20] sm:$0xff]
        %v214 = vld [vmem:[%s203 + $0x28] sm:$0xff]
        %v215 = vld [vmem:[%s203 + $0x30] sm:$0xff]
        %v216 = vld [vmem:[%s203 + $0x38] sm:$0xff]
        %v217 = vld [vmem:[%s203 + $0x40] sm:$0xff]
        %v218 = vld [vmem:[%s203 + $0x48] sm:$0xff]
        %v219 = vld [vmem:[%s203 + $0x50] sm:$0xff]
        %v220 = vld [vmem:[%s203 + $0x58] sm:$0xff]
        %v221 = vld [vmem:[%s203 + $0x60] sm:$0xff]
        %v222 = vld [vmem:[%s203 + $0x68] sm:$0xff]
        %v223 = vld [vmem:[%s203 + $0x70] sm:$0xff]
        %v224 = vld [vmem:[%s203 + $0x78] sm:$0xff]
        %v225 = vld [vmem:[%s203 + $0x80] sm:$0xff]
        %v226 = vld [vmem:[%s203 + $0x88] sm:$0xff]
        %v227 = vld [vmem:[%s203 + $0x90] sm:$0xff]
        %v228 = vld [vmem:[%s203 + $0x98] sm:$0xff]
        %v229 = vld [vmem:[%s203 + $0xa0] sm:$0xff]
        %v230 = vld [vmem:[%s203 + $0xa8] sm:$0xff]
        %v231 = vld [vmem:[%s203 + $0xb0] sm:$0xff]
        %v232 = vld [vmem:[%s203 + $0xb8] sm:$0xff]
        %v233 = vld [vmem:[%s203 + $0xc0] sm:$0xff]
        %v234 = vld [vmem:[%s203 + $0xc8] sm:$0xff]
        %v235 = vld [vmem:[%s203 + $0xd0] sm:$0xff]
        %v236 = vld [vmem:[%s203 + $0xd8] sm:$0xff]
        %v237 = vld [vmem:[%s203 + $0xe0] sm:$0xff]
        %v238 = vld [vmem:[%s203 + $0xe8] sm:$0xff]
        %v239 = vld [vmem:[%s203 + $0xf0] sm:$0xff]
        %v240 = vld [vmem:[%s203 + $0xf8] sm:$0xff]
        %v241 = vld [vmem:[%s1] sm:$0xff]
        %v242 = vld [vmem:[%s1 + $0x8] sm:$0xff]
        %v243 = vld [vmem:[%s1 + $0x10] sm:$0xff]
        %v244 = vld [vmem:[%s1 + $0x18] sm:$0xff]
        %v245 = vld [vmem:[%s1 + $0x20] sm:$0xf]
        %v246 = vld [vmem:[%s2] sm:$0x1]
        %v248 = vlaneseq
        %v249 = vshrl.u32 %v248, 7
        %v250 = vsub.s32 0, %v249
        %v251 = vrot.slane %v246, %v250
        %vm253 = vcmask 293888
        %v255 = vsel %vm253, %v209, 0
        %v258 = vsel %vm253, %v210, 0
        %v261 = vsel %vm253, %v211, 0
        %v264 = vsel %vm253, %v212, 0
        %v267 = vsel %vm253, %v213, 0
        %v270 = vsel %vm253, %v214, 0
        %v273 = vsel %vm253, %v215, 0
        %v276 = vsel %vm253, %v216, 0
        %v279 = vsel %vm253, %v217, 0
        %v282 = vsel %vm253, %v218, 0
        %v285 = vsel %vm253, %v219, 0
        %v288 = vsel %vm253, %v220, 0
        %v291 = vsel %vm253, %v221, 0
        %v294 = vsel %vm253, %v222, 0
        %v297 = vsel %vm253, %v223, 0
        %v300 = vsel %vm253, %v224, 0
        %v303 = vsel %vm253, %v225, 0
        %v306 = vsel %vm253, %v226, 0
        %v309 = vsel %vm253, %v227, 0
        %v312 = vsel %vm253, %v228, 0
        %v315 = vsel %vm253, %v229, 0
        %v318 = vsel %vm253, %v230, 0
        %v321 = vsel %vm253, %v231, 0
        %v324 = vsel %vm253, %v232, 0
        %v327 = vsel %vm253, %v233, 0
        %v330 = vsel %vm253, %v234, 0
        %v333 = vsel %vm253, %v235, 0
        %v336 = vsel %vm253, %v236, 0
        %v339 = vsel %vm253, %v237, 0
        %v342 = vsel %vm253, %v238, 0
        %v345 = vsel %vm253, %v239, 0
        %v348 = vsel %vm253, %v240, 0
        %vm350 = vcmask 1043456
        %v352 = vsel %vm350, %v245, 0
        %354 = vmatprep.subr.mxu0 0.0
        %355 = vmatpush1.msra.mxu0 %v241
        %356 = vmatprep.subr.mxu0 0.0
        %357 = vmatpush1.msra.mxu0 %v242
        %358 = vmatprep.subr.mxu0 0.0
        %359 = vmatpush1.msra.mxu0 %v243
        %360 = vmatprep.subr.mxu0 0.0
        %361 = vmatpush1.msra.mxu0 %v244
        %362 = vmatprep.subr.mxu0 0.0
        %363 = vmatpush1.msra.mxu0 %v352
        %364 = vmatprep.subr.mxu0 0.0
        %365 = vmatpush1.msra.mxu0 0.0
        %366 = vmatprep.subr.mxu0 0.0
        %367 = vmatpush1.msra.mxu0 0.0
        %368 = vmatprep.subr.mxu0 0.0
        %369 = vmatpush1.msra.mxu0 0.0
        %370 = vmatprep.subr.mxu0 0.0
        %371 = vmatpush1.msra.mxu0 0.0
        %372 = vmatprep.subr.mxu0 0.0
        %373 = vmatpush1.msra.mxu0 0.0
        %374 = vmatprep.subr.mxu0 0.0
        %375 = vmatpush1.msra.mxu0 0.0
        %376 = vmatprep.subr.mxu0 0.0
        %377 = vmatpush1.msra.mxu0 0.0
        %378 = vmatprep.subr.mxu0 0.0
        %379 = vmatpush1.msra.mxu0 0.0
        %380 = vmatprep.subr.mxu0 0.0
        %381 = vmatpush1.msra.mxu0 0.0
        %382 = vmatprep.subr.mxu0 0.0
        %383 = vmatpush1.msra.mxu0 0.0
        %384 = vmatprep.subr.mxu0 0.0
        %385 = vmatpush1.msra.mxu0 0.0
        %386 = vmatprep.subr.mxu0 0.0
        %387 = vmatpush1.msra.mxu0 0.0
        %388 = vmatprep.subr.mxu0 0.0
        %389 = vmatpush1.msra.mxu0 0.0
        %390 = vmatprep.subr.mxu0 0.0
        %391 = vmatpush1.msra.mxu0 0.0
        %392 = vmatprep.subr.mxu0 0.0
        %393 = vmatpush1.msra.mxu0 0.0
        %394 = vmatprep.subr.mxu0 0.0
        %395 = vmatpush1.msra.mxu0 0.0
        %396 = vmatprep.subr.mxu0 0.0
        %397 = vmatpush1.msra.mxu0 0.0
        %398 = vmatprep.subr.mxu0 0.0
        %399 = vmatpush1.msra.mxu0 0.0
        %400 = vmatprep.subr.mxu0 0.0
        %401 = vmatpush1.msra.mxu0 0.0
        %402 = vmatprep.subr.mxu0 0.0
        %403 = vmatpush1.msra.mxu0 0.0
        %404 = vmatprep.subr.mxu0 0.0
        %405 = vmatpush1.msra.mxu0 0.0
        %406 = vmatprep.subr.mxu0 0.0
        %407 = vmatpush1.msra.mxu0 0.0
        %408 = vmatprep.subr.mxu0 0.0
        %409 = vmatpush1.msra.mxu0 0.0
        %410 = vmatprep.subr.mxu0 0.0
        %411 = vmatpush1.msra.mxu0 0.0
        %412 = vmatprep.subr.mxu0 0.0
        %413 = vmatpush1.msra.mxu0 0.0
        %414 = vmatprep.subr.mxu0 0.0
        %415 = vmatpush1.msra.mxu0 0.0
        %416 = vmatprep.subr.mxu0 0.0
        %417 = vmatpush1.msra.mxu0 0.0
        %418 = vmatprep.mubr.f32.mxu0 0.0
        %419 = vmatmul.mubr.f32.gmra.mrb[0].mxu0 %v255
        %v420 = vpop.f32.mrb[0].mxu0
        %v421 = vadd.f32 %v251, %v420
        %v422 = vpop.f32.mrb[0].mxu0
        %423 = vmatprep.mubr.f32.mxu0 0.0
        %424 = vmatmul.mubr.f32.gmra.mrb[0].mxu0 %v258
        %v425 = vpop.f32.mrb[0].mxu0
        %v426 = vadd.f32 %v251, %v425
        %v427 = vpop.f32.mrb[0].mxu0
        %428 = vmatprep.mubr.f32.mxu0 0.0
        %429 = vmatmul.mubr.f32.gmra.mrb[0].mxu0 %v261
        %v430 = vpop.f32.mrb[0].mxu0
        %v431 = vadd.f32 %v251, %v430
        %v432 = vpop.f32.mrb[0].mxu0
        %433 = vmatprep.mubr.f32.mxu0 0.0
        %434 = vmatmul.mubr.f32.gmra.mrb[0].mxu0 %v264
        %v435 = vpop.f32.mrb[0].mxu0
        %v436 = vadd.f32 %v251, %v435
        %v437 = vpop.f32.mrb[0].mxu0
        %438 = vmatprep.mubr.f32.mxu0 0.0
        %439 = vmatmul.mubr.f32.gmra.mrb[0].mxu0 %v267
        %v440 = vpop.f32.mrb[0].mxu0
        %v441 = vadd.f32 %v251, %v440
        %v442 = vpop.f32.mrb[0].mxu0
        %443 = vmatprep.mubr.f32.mxu0 0.0
        %444 = vmatmul.mubr.f32.gmra.mrb[0].mxu0 %v270
        %v445 = vpop.f32.mrb[0].mxu0
        %v446 = vadd.f32 %v251, %v445
        %v447 = vpop.f32.mrb[0].mxu0
        %448 = vmatprep.mubr.f32.mxu0 0.0
        %449 = vmatmul.mubr.f32.gmra.mrb[0].mxu0 %v273
        %v450 = vpop.f32.mrb[0].mxu0
        %v451 = vadd.f32 %v251, %v450
        %v452 = vpop.f32.mrb[0].mxu0
        %453 = vmatprep.mubr.f32.mxu0 0.0
        %454 = vmatmul.mubr.f32.gmra.mrb[0].mxu0 %v276
        %v455 = vpop.f32.mrb[0].mxu0
        %v456 = vadd.f32 %v251, %v455
        %v457 = vpop.f32.mrb[0].mxu0
        %458 = vmatprep.mubr.f32.mxu0 0.0
        %459 = vmatmul.mubr.f32.gmra.mrb[0].mxu0 %v279
        %v460 = vpop.f32.mrb[0].mxu0
        %v461 = vadd.f32 %v251, %v460
        %v462 = vpop.f32.mrb[0].mxu0
        %463 = vmatprep.mubr.f32.mxu0 0.0
        %464 = vmatmul.mubr.f32.gmra.mrb[0].mxu0 %v282
        %v465 = vpop.f32.mrb[0].mxu0
        %v466 = vadd.f32 %v251, %v465
        %v467 = vpop.f32.mrb[0].mxu0
        %468 = vmatprep.mubr.f32.mxu0 0.0
        %469 = vmatmul.mubr.f32.gmra.mrb[0].mxu0 %v285
        %v470 = vpop.f32.mrb[0].mxu0
        %v471 = vadd.f32 %v251, %v470
        %v472 = vpop.f32.mrb[0].mxu0
        %473 = vmatprep.mubr.f32.mxu0 0.0
        %474 = vmatmul.mubr.f32.gmra.mrb[0].mxu0 %v288
        %v475 = vpop.f32.mrb[0].mxu0
        %v476 = vadd.f32 %v251, %v475
        %v477 = vpop.f32.mrb[0].mxu0
        %478 = vmatprep.mubr.f32.mxu0 0.0
        %479 = vmatmul.mubr.f32.gmra.mrb[0].mxu0 %v291
        %v480 = vpop.f32.mrb[0].mxu0
        %v481 = vadd.f32 %v251, %v480
        %v482 = vpop.f32.mrb[0].mxu0
        %483 = vmatprep.mubr.f32.mxu0 0.0
        %484 = vmatmul.mubr.f32.gmra.mrb[0].mxu0 %v294
        %v485 = vpop.f32.mrb[0].mxu0
        %v486 = vadd.f32 %v251, %v485
        %v487 = vpop.f32.mrb[0].mxu0
        %488 = vmatprep.mubr.f32.mxu0 0.0
        %489 = vmatmul.mubr.f32.gmra.mrb[0].mxu0 %v297
        %v490 = vpop.f32.mrb[0].mxu0
        %v491 = vadd.f32 %v251, %v490
        %v492 = vpop.f32.mrb[0].mxu0
        %493 = vmatprep.mubr.f32.mxu0 0.0
        %494 = vmatmul.mubr.f32.gmra.mrb[0].mxu0 %v300
        %v495 = vpop.f32.mrb[0].mxu0
        %v496 = vadd.f32 %v251, %v495
        %v497 = vpop.f32.mrb[0].mxu0
        %498 = vmatprep.mubr.f32.mxu0 0.0
        %499 = vmatmul.mubr.f32.gmra.mrb[0].mxu0 %v303
        %v500 = vpop.f32.mrb[0].mxu0
        %v501 = vadd.f32 %v251, %v500
        %v502 = vpop.f32.mrb[0].mxu0
        %503 = vmatprep.mubr.f32.mxu0 0.0
        %504 = vmatmul.mubr.f32.gmra.mrb[0].mxu0 %v306
        %v505 = vpop.f32.mrb[0].mxu0
        %v506 = vadd.f32 %v251, %v505
        %v507 = vpop.f32.mrb[0].mxu0
        %508 = vmatprep.mubr.f32.mxu0 0.0
        %509 = vmatmul.mubr.f32.gmra.mrb[0].mxu0 %v309
        %v510 = vpop.f32.mrb[0].mxu0
        %v511 = vadd.f32 %v251, %v510
        %v512 = vpop.f32.mrb[0].mxu0
        %513 = vmatprep.mubr.f32.mxu0 0.0
        %514 = vmatmul.mubr.f32.gmra.mrb[0].mxu0 %v312
        %v515 = vpop.f32.mrb[0].mxu0
        %v516 = vadd.f32 %v251, %v515
        %v517 = vpop.f32.mrb[0].mxu0
        %518 = vmatprep.mubr.f32.mxu0 0.0
        %519 = vmatmul.mubr.f32.gmra.mrb[0].mxu0 %v315
        %v520 = vpop.f32.mrb[0].mxu0
        %v521 = vadd.f32 %v251, %v520
        %v522 = vpop.f32.mrb[0].mxu0
        %523 = vmatprep.mubr.f32.mxu0 0.0
        %524 = vmatmul.mubr.f32.gmra.mrb[0].mxu0 %v318
        %v525 = vpop.f32.mrb[0].mxu0
        %v526 = vadd.f32 %v251, %v525
        %v527 = vpop.f32.mrb[0].mxu0
        %528 = vmatprep.mubr.f32.mxu0 0.0
        %529 = vmatmul.mubr.f32.gmra.mrb[0].mxu0 %v321
        %v530 = vpop.f32.mrb[0].mxu0
        %v531 = vadd.f32 %v251, %v530
        %v532 = vpop.f32.mrb[0].mxu0
        %533 = vmatprep.mubr.f32.mxu0 0.0
        %534 = vmatmul.mubr.f32.gmra.mrb[0].mxu0 %v324
        %v535 = vpop.f32.mrb[0].mxu0
        %v536 = vadd.f32 %v251, %v535
        %v537 = vpop.f32.mrb[0].mxu0
        %538 = vmatprep.mubr.f32.mxu0 0.0
        %539 = vmatmul.mubr.f32.gmra.mrb[0].mxu0 %v327
        %v540 = vpop.f32.mrb[0].mxu0
        %v541 = vadd.f32 %v251, %v540
        %v542 = vpop.f32.mrb[0].mxu0
        %543 = vmatprep.mubr.f32.mxu0 0.0
        %544 = vmatmul.mubr.f32.gmra.mrb[0].mxu0 %v330
        %v545 = vpop.f32.mrb[0].mxu0
        %v546 = vadd.f32 %v251, %v545
        %v547 = vpop.f32.mrb[0].mxu0
        %548 = vmatprep.mubr.f32.mxu0 0.0
        %549 = vmatmul.mubr.f32.gmra.mrb[0].mxu0 %v333
        %v550 = vpop.f32.mrb[0].mxu0
        %v551 = vadd.f32 %v251, %v550
        %v552 = vpop.f32.mrb[0].mxu0
        %553 = vmatprep.mubr.f32.mxu0 0.0
        %554 = vmatmul.mubr.f32.gmra.mrb[0].mxu0 %v336
        %v555 = vpop.f32.mrb[0].mxu0
        %v556 = vadd.f32 %v251, %v555
        %v557 = vpop.f32.mrb[0].mxu0
        %558 = vmatprep.mubr.f32.mxu0 0.0
        %559 = vmatmul.mubr.f32.gmra.mrb[0].mxu0 %v339
        %v560 = vpop.f32.mrb[0].mxu0
        %v561 = vadd.f32 %v251, %v560
        %v562 = vpop.f32.mrb[0].mxu0
        %563 = vmatprep.mubr.f32.mxu0 0.0
        %564 = vmatmul.mubr.f32.gmra.mrb[0].mxu0 %v342
        %v565 = vpop.f32.mrb[0].mxu0
        %v566 = vadd.f32 %v251, %v565
        %v567 = vpop.f32.mrb[0].mxu0
        %568 = vmatprep.mubr.f32.mxu0 0.0
        %569 = vmatmul.mubr.f32.gmra.mrb[0].mxu0 %v345
        %v570 = vpop.f32.mrb[0].mxu0
        %v571 = vadd.f32 %v251, %v570
        %v572 = vpop.f32.mrb[0].mxu0
        %573 = vmatprep.mubr.f32.mxu0 0.0
        %574 = vmatmul.mubr.f32.gmra.mrb[0].mxu0 %v348
        %v575 = vpop.f32.mrb[0].mxu0
        %v576 = vadd.f32 %v251, %v575
        %v577 = vpop.f32.mrb[0].mxu0
        %578 = vdwg.mxu0
        %v579 = vmax.f32 %v421, %v441
        %v580 = vmax.f32 %v426, %v446
        %v581 = vmax.f32 %v431, %v451
        %v582 = vmax.f32 %v436, %v456
        %v583 = vmax.f32 %v579, %v461
        %v584 = vmax.f32 %v580, %v466
        %v585 = vmax.f32 %v581, %v471
        %v586 = vmax.f32 %v582, %v476
        %v587 = vmax.f32 %v583, %v481
        %v588 = vmax.f32 %v584, %v486
        %v589 = vmax.f32 %v585, %v491
        %v590 = vmax.f32 %v586, %v496
        %v591 = vmax.f32 %v587, %v501
        %v592 = vmax.f32 %v588, %v506
        %v593 = vmax.f32 %v589, %v511
        %v594 = vmax.f32 %v590, %v516
        %v595 = vmax.f32 %v591, %v521
        %v596 = vmax.f32 %v592, %v526
        %v597 = vmax.f32 %v593, %v531
        %v598 = vmax.f32 %v594, %v536
        %v599 = vmax.f32 %v595, %v541
        %v600 = vmax.f32 %v596, %v546
        %v601 = vmax.f32 %v597, %v551
        %v602 = vmax.f32 %v598, %v556
        %v603 = vmax.f32 %v599, %v561
        %v604 = vmax.f32 %v600, %v566
        %v605 = vmax.f32 %v601, %v571
        %v606 = vmax.f32 %v602, %v576
        %v607 = vmax.f32 %v603, %v604
        %v608 = vmax.f32 %v605, %v606
        %v609 = vmax.f32 %v607, %v608
        %v610 = vrot.slane %v609, 4
        %v611 = vmax.f32 %v609, %v610
        %v612 = vrot.slane %v611, 2
        %v613 = vmax.f32 %v611, %v612
        %v614 = vrot.slane %v613, 1
        %v615 = vmax.f32 %v613, %v614
        %v616 = vsub.f32 %v421, %v615
        %v617 = vsub.f32 %v426, %v615
        %v618 = vsub.f32 %v431, %v615
        %v619 = vsub.f32 %v436, %v615
        %v620 = vsub.f32 %v441, %v615
        %v621 = vsub.f32 %v446, %v615
        %v622 = vsub.f32 %v451, %v615
        %v623 = vsub.f32 %v456, %v615
        %v624 = vsub.f32 %v461, %v615
        %v625 = vsub.f32 %v466, %v615
        %v626 = vsub.f32 %v471, %v615
        %v627 = vsub.f32 %v476, %v615
        %v628 = vsub.f32 %v481, %v615
        %v629 = vsub.f32 %v486, %v615
        %v630 = vsub.f32 %v491, %v615
        %v631 = vsub.f32 %v496, %v615
        %v632 = vsub.f32 %v501, %v615
        %v633 = vsub.f32 %v506, %v615
        %v634 = vsub.f32 %v511, %v615
        %v635 = vsub.f32 %v516, %v615
        %v636 = vsub.f32 %v521, %v615
        %v637 = vsub.f32 %v526, %v615
        %v638 = vsub.f32 %v531, %v615
        %v639 = vsub.f32 %v536, %v615
        %v640 = vsub.f32 %v541, %v615
        %v641 = vsub.f32 %v546, %v615
        %v642 = vsub.f32 %v551, %v615
        %v643 = vsub.f32 %v556, %v615
        %v644 = vsub.f32 %v561, %v615
        %v645 = vsub.f32 %v566, %v615
        %v646 = vsub.f32 %v571, %v615
        %v647 = vsub.f32 %v576, %v615
        %v648 = vmul.f32 %v616, 1.442695
        %v649 = vpow.pop %v648
        %v650 = vmul.f32 %v617, 1.442695
        %v651 = vpow.pop %v650
        %v652 = vmul.f32 %v618, 1.442695
        %v653 = vpow.pop %v652
        %v654 = vmul.f32 %v619, 1.442695
        %v655 = vpow.pop %v654
        %v656 = vmul.f32 %v620, 1.442695
        %v657 = vpow.pop %v656
        %v658 = vmul.f32 %v621, 1.442695
        %v659 = vpow.pop %v658
        %v660 = vmul.f32 %v622, 1.442695
        %v661 = vpow.pop %v660
        %v662 = vmul.f32 %v623, 1.442695
        %v663 = vpow.pop %v662
        %v664 = vmul.f32 %v624, 1.442695
        %v665 = vpow.pop %v664
        %v666 = vmul.f32 %v625, 1.442695
        %v667 = vpow.pop %v666
        %v668 = vmul.f32 %v626, 1.442695
        %v669 = vpow.pop %v668
        %v670 = vmul.f32 %v627, 1.442695
        %v671 = vpow.pop %v670
        %v672 = vmul.f32 %v628, 1.442695
        %v673 = vpow.pop %v672
        %v674 = vmul.f32 %v629, 1.442695
        %v675 = vpow.pop %v674
        %v676 = vmul.f32 %v630, 1.442695
        %v677 = vpow.pop %v676
        %v678 = vmul.f32 %v631, 1.442695
        %v679 = vpow.pop %v678
        %v680 = vmul.f32 %v632, 1.442695
        %v681 = vpow.pop %v680
        %v682 = vmul.f32 %v633, 1.442695
        %v683 = vpow.pop %v682
        %v684 = vmul.f32 %v634, 1.442695
        %v685 = vpow.pop %v684
        %v686 = vmul.f32 %v635, 1.442695
        %v687 = vpow.pop %v686
        %v688 = vmul.f32 %v636, 1.442695
        %v689 = vpow.pop %v688
        %v690 = vmul.f32 %v637, 1.442695
        %v691 = vpow.pop %v690
        %v692 = vmul.f32 %v638, 1.442695
        %v693 = vpow.pop %v692
        %v694 = vmul.f32 %v639, 1.442695
        %v695 = vpow.pop %v694
        %v696 = vmul.f32 %v640, 1.442695
        %v697 = vpow.pop %v696
        %v698 = vmul.f32 %v641, 1.442695
        %v699 = vpow.pop %v698
        %v700 = vmul.f32 %v642, 1.442695
        %v701 = vpow.pop %v700
        %v702 = vmul.f32 %v643, 1.442695
        %v703 = vpow.pop %v702
        %v704 = vmul.f32 %v644, 1.442695
        %v705 = vpow.pop %v704
        %v706 = vmul.f32 %v645, 1.442695
        %v707 = vpow.pop %v706
        %v708 = vmul.f32 %v646, 1.442695
        %v709 = vpow.pop %v708
        %v710 = vmul.f32 %v647, 1.442695
        %v711 = vpow.pop %v710
        %v712 = vadd.f32 %v649, %v651
        %v713 = vadd.f32 %v712, %v653
        %v714 = vadd.f32 %v713, %v655
        %v715 = vadd.f32 %v714, %v657
        %v716 = vadd.f32 %v715, %v659
        %v717 = vadd.f32 %v716, %v661
        %v718 = vadd.f32 %v717, %v663
        %v719 = vadd.f32 %v718, %v665
        %v720 = vadd.f32 %v719, %v667
        %v721 = vadd.f32 %v720, %v669
        %v722 = vadd.f32 %v721, %v671
        %v723 = vadd.f32 %v722, %v673
        %v724 = vadd.f32 %v723, %v675
        %v725 = vadd.f32 %v724, %v677
        %v726 = vadd.f32 %v725, %v679
        %v727 = vadd.f32 %v726, %v681
        %v728 = vadd.f32 %v727, %v683
        %v729 = vadd.f32 %v728, %v685
        %v730 = vadd.f32 %v729, %v687
        %v731 = vadd.f32 %v730, %v689
        %v732 = vadd.f32 %v731, %v691
        %v733 = vadd.f32 %v732, %v693
        %v734 = vadd.f32 %v733, %v695
        %v735 = vadd.f32 %v734, %v697
        %v736 = vadd.f32 %v735, %v699
        %v737 = vadd.f32 %v736, %v701
        %v738 = vadd.f32 %v737, %v703
        %v739 = vadd.f32 %v738, %v705
        %v740 = vadd.f32 %v739, %v707
        %v741 = vadd.f32 %v740, %v709
        %v742 = vadd.f32 %v741, %v711
        %v743 = vrot.slane %v742, 4
        %v744 = vadd.f32 %v742, %v743
        %v745 = vrot.slane %v744, 2
        %v746 = vadd.f32 %v744, %v745
        %v747 = vrot.slane %v746, 1
        %v748 = vadd.f32 %v746, %v747
        %v749 = vrcp.pop %v748
        %v750 = vmul.f32 1.0, %v749
        %v751 = vmul.f32 %v649, %v750
        %v752 = vmul.f32 %v651, %v750
        %v753 = vmul.f32 %v653, %v750
        %v754 = vmul.f32 %v655, %v750
        %v755 = vmul.f32 %v657, %v750
        %v756 = vmul.f32 %v659, %v750
        %v757 = vmul.f32 %v661, %v750
        %v758 = vmul.f32 %v663, %v750
        %v759 = vmul.f32 %v665, %v750
        %v760 = vmul.f32 %v667, %v750
        %v761 = vmul.f32 %v669, %v750
        %v762 = vmul.f32 %v671, %v750
        %v763 = vmul.f32 %v673, %v750
        %v764 = vmul.f32 %v675, %v750
        %v765 = vmul.f32 %v677, %v750
        %v766 = vmul.f32 %v679, %v750
        %v767 = vmul.f32 %v681, %v750
        %v768 = vmul.f32 %v683, %v750
        %v769 = vmul.f32 %v685, %v750
        %v770 = vmul.f32 %v687, %v750
        %v771 = vmul.f32 %v689, %v750
        %v772 = vmul.f32 %v691, %v750
        %v773 = vmul.f32 %v693, %v750
        %v774 = vmul.f32 %v695, %v750
        %v775 = vmul.f32 %v697, %v750
        %v776 = vmul.f32 %v699, %v750
        %v777 = vmul.f32 %v701, %v750
        %v778 = vmul.f32 %v703, %v750
        %v779 = vmul.f32 %v705, %v750
        %v780 = vmul.f32 %v707, %v750
        %v781 = vmul.f32 %v709, %v750
        %v782 = vmul.f32 %v711, %v750
        %783 = vst [vmem:[%s198] sm:$0xff] %v751
        %784 = vst [vmem:[%s198 + $0x8] sm:$0xff] %v752
        %785 = vst [vmem:[%s198 + $0x10] sm:$0xff] %v753
        %786 = vst [vmem:[%s198 + $0x18] sm:$0xff] %v754
        %787 = vst [vmem:[%s198 + $0x20] sm:$0xff] %v755
        %788 = vst [vmem:[%s198 + $0x28] sm:$0xff] %v756
        %789 = vst [vmem:[%s198 + $0x30] sm:$0xff] %v757
        %790 = vst [vmem:[%s198 + $0x38] sm:$0xff] %v758
        %791 = vst [vmem:[%s198 + $0x40] sm:$0xff] %v759
        %792 = vst [vmem:[%s198 + $0x48] sm:$0xff] %v760
        %793 = vst [vmem:[%s198 + $0x50] sm:$0xff] %v761
        %794 = vst [vmem:[%s198 + $0x58] sm:$0xff] %v762
        %795 = vst [vmem:[%s198 + $0x60] sm:$0xff] %v763
        %796 = vst [vmem:[%s198 + $0x68] sm:$0xff] %v764
        %797 = vst [vmem:[%s198 + $0x70] sm:$0xff] %v765
        %798 = vst [vmem:[%s198 + $0x78] sm:$0xff] %v766
        %799 = vst [vmem:[%s198 + $0x80] sm:$0xff] %v767
        %800 = vst [vmem:[%s198 + $0x88] sm:$0xff] %v768
        %801 = vst [vmem:[%s198 + $0x90] sm:$0xff] %v769
        %802 = vst [vmem:[%s198 + $0x98] sm:$0xff] %v770
        %803 = vst [vmem:[%s198 + $0xa0] sm:$0xff] %v771
        %804 = vst [vmem:[%s198 + $0xa8] sm:$0xff] %v772
        %805 = vst [vmem:[%s198 + $0xb0] sm:$0xff] %v773
        %806 = vst [vmem:[%s198 + $0xb8] sm:$0xff] %v774
        %807 = vst [vmem:[%s198 + $0xc0] sm:$0xff] %v775
        %808 = vst [vmem:[%s198 + $0xc8] sm:$0xff] %v776
        %809 = vst [vmem:[%s198 + $0xd0] sm:$0xff] %v777
        %810 = vst [vmem:[%s198 + $0xd8] sm:$0xff] %v778
        %811 = vst [vmem:[%s198 + $0xe0] sm:$0xff] %v779
        %812 = vst [vmem:[%s198 + $0xe8] sm:$0xff] %v780
        %813 = vst [vmem:[%s198 + $0xf0] sm:$0xff] %v781
        %814 = vst [vmem:[%s198 + $0xf8] sm:$0xff] %v782
        %815 = vxpose.xlu0.b32.start [1/16] %v751, 128
        %816 = vxpose.xlu0.b32.cont [2/16] %v752, 128
        %817 = vxpose.xlu0.b32.cont [3/16] %v753, 128
        %818 = vxpose.xlu0.b32.cont [4/16] %v754, 128
        %819 = vxpose.xlu0.b32.cont [5/16] %v755, 128
        %820 = vxpose.xlu0.b32.cont [6/16] %v756, 128
        %821 = vxpose.xlu0.b32.cont [7/16] %v757, 128
        %822 = vxpose.xlu0.b32.cont [8/16] %v758, 128
        %823 = vxpose.xlu0.b32.cont [9/16] %v759, 128
        %824 = vxpose.xlu0.b32.cont [10/16] %v760, 128
        %825 = vxpose.xlu0.b32.cont [11/16] %v761, 128
        %826 = vxpose.xlu0.b32.cont [12/16] %v762, 128
        %827 = vxpose.xlu0.b32.cont [13/16] %v763, 128
        %828 = vxpose.xlu0.b32.cont [14/16] %v764, 128
        %829 = vxpose.xlu0.b32.cont [15/16] %v765, 128
        %830 = vxpose.xlu0.b32.end [16/16] %v766, 128
        %v831 = vpop.trf.xlu0
        %v832 = vpop.trf.xlu0
        %v833 = vpop.trf.xlu0
        %v834 = vpop.trf.xlu0
        %v835 = vpop.trf.xlu0
        %v836 = vpop.trf.xlu0
        %v837 = vpop.trf.xlu0
        %v838 = vpop.trf.xlu0
        %v839 = vpop.trf.xlu0
        %v840 = vpop.trf.xlu0
        %v841 = vpop.trf.xlu0
        %v842 = vpop.trf.xlu0
        %v843 = vpop.trf.xlu0
        %v844 = vpop.trf.xlu0
        %v845 = vpop.trf.xlu0
        %v846 = vpop.trf.xlu0
        %847 = vxpose.xlu0.b32.start [1/16] %v767, 128
        %848 = vxpose.xlu0.b32.cont [2/16] %v768, 128
        %849 = vxpose.xlu0.b32.cont [3/16] %v769, 128
        %850 = vxpose.xlu0.b32.cont [4/16] %v770, 128
        %851 = vxpose.xlu0.b32.cont [5/16] %v771, 128
        %852 = vxpose.xlu0.b32.cont [6/16] %v772, 128
        %853 = vxpose.xlu0.b32.cont [7/16] %v773, 128
        %854 = vxpose.xlu0.b32.cont [8/16] %v774, 128
        %855 = vxpose.xlu0.b32.cont [9/16] %v775, 128
        %856 = vxpose.xlu0.b32.cont [10/16] %v776, 128
        %857 = vxpose.xlu0.b32.cont [11/16] %v777, 128
        %858 = vxpose.xlu0.b32.cont [12/16] %v778, 128
        %859 = vxpose.xlu0.b32.cont [13/16] %v779, 128
        %860 = vxpose.xlu0.b32.cont [14/16] %v780, 128
        %861 = vxpose.xlu0.b32.cont [15/16] %v781, 128
        %862 = vxpose.xlu0.b32.end [16/16] %v782, 128
        %v863 = vpop.trf.xlu0
        %v864 = vpop.trf.xlu0
        %v865 = vpop.trf.xlu0
        %v866 = vpop.trf.xlu0
        %v867 = vpop.trf.xlu0
        %v868 = vpop.trf.xlu0
        %v869 = vpop.trf.xlu0
        %v870 = vpop.trf.xlu0
        %v871 = vpop.trf.xlu0
        %v872 = vpop.trf.xlu0
        %v873 = vpop.trf.xlu0
        %v874 = vpop.trf.xlu0
        %v875 = vpop.trf.xlu0
        %v876 = vpop.trf.xlu0
        %v877 = vpop.trf.xlu0
        %v878 = vpop.trf.xlu0
        %879 = vmatprep.subr.mxu0 0.0
        %880 = vmatpush1.msra.mxu0 %v209
        %881 = vmatprep.subr.mxu0 0.0
        %882 = vmatpush1.msra.mxu0 %v210
        %883 = vmatprep.subr.mxu0 0.0
        %884 = vmatpush1.msra.mxu0 %v211
        %885 = vmatprep.subr.mxu0 0.0
        %886 = vmatpush1.msra.mxu0 %v212
        %887 = vmatprep.subr.mxu0 0.0
        %888 = vmatpush1.msra.mxu0 %v213
        %889 = vmatprep.subr.mxu0 0.0
        %890 = vmatpush1.msra.mxu0 %v214
        %891 = vmatprep.subr.mxu0 0.0
        %892 = vmatpush1.msra.mxu0 %v215
        %893 = vmatprep.subr.mxu0 0.0
        %894 = vmatpush1.msra.mxu0 %v216
        %895 = vmatprep.subr.mxu0 0.0
        %896 = vmatpush1.msra.mxu0 %v217
        %897 = vmatprep.subr.mxu0 0.0
        %898 = vmatpush1.msra.mxu0 %v218
        %899 = vmatprep.subr.mxu0 0.0
        %900 = vmatpush1.msra.mxu0 %v219
        %901 = vmatprep.subr.mxu0 0.0
        %902 = vmatpush1.msra.mxu0 %v220
        %903 = vmatprep.subr.mxu0 0.0
        %904 = vmatpush1.msra.mxu0 %v221
        %905 = vmatprep.subr.mxu0 0.0
        %906 = vmatpush1.msra.mxu0 %v222
        %907 = vmatprep.subr.mxu0 0.0
        %908 = vmatpush1.msra.mxu0 %v223
        %909 = vmatprep.subr.mxu0 0.0
        %910 = vmatpush1.msra.mxu0 %v224
        %911 = vmatprep.subr.mxu0 0.0
        %912 = vmatpush1.msra.mxu0 %v225
        %913 = vmatprep.subr.mxu0 0.0
        %914 = vmatpush1.msra.mxu0 %v226
        %915 = vmatprep.subr.mxu0 0.0
        %916 = vmatpush1.msra.mxu0 %v227
        %917 = vmatprep.subr.mxu0 0.0
        %918 = vmatpush1.msra.mxu0 %v228
        %919 = vmatprep.subr.mxu0 0.0
        %920 = vmatpush1.msra.mxu0 %v229
        %921 = vmatprep.subr.mxu0 0.0
        %922 = vmatpush1.msra.mxu0 %v230
        %923 = vmatprep.subr.mxu0 0.0
        %924 = vmatpush1.msra.mxu0 %v231
        %925 = vmatprep.subr.mxu0 0.0
        %926 = vmatpush1.msra.mxu0 %v232
        %927 = vmatprep.subr.mxu0 0.0
        %928 = vmatpush1.msra.mxu0 %v233
        %929 = vmatprep.subr.mxu0 0.0
        %930 = vmatpush1.msra.mxu0 %v234
        %931 = vmatprep.subr.mxu0 0.0
        %932 = vmatpush1.msra.mxu0 %v235
        %933 = vmatprep.subr.mxu0 0.0
        %934 = vmatpush1.msra.mxu0 %v236
        %935 = vmatprep.subr.mxu0 0.0
        %936 = vmatpush1.msra.mxu0 %v237
        %937 = vmatprep.subr.mxu0 0.0
        %938 = vmatpush1.msra.mxu0 %v238
        %939 = vmatprep.subr.mxu0 0.0
        %940 = vmatpush1.msra.mxu0 %v239
        %941 = vmatprep.subr.mxu0 0.0
        %942 = vmatpush1.msra.mxu0 %v240
        %943 = vmatprep.mubr.f32.mxu0 %v863
        %944 = vmatmul.mubr.f32.gmra.mrb[0].mxu0 %v831
        %v945 = vpop.f32.mrb[0].mxu0
        %v946 = vadd.f32 0.0, %v945
        %v947 = vpop.f32.mrb[0].mxu0
        %948 = vmatprep.mubr.f32.mxu0 %v864
        %949 = vmatmul.mubr.f32.gmra.mrb[0].mxu0 %v832
        %v950 = vpop.f32.mrb[0].mxu0
        %v951 = vadd.f32 0.0, %v950
        %v952 = vpop.f32.mrb[0].mxu0
        %953 = vmatprep.mubr.f32.mxu0 %v865
        %954 = vmatmul.mubr.f32.gmra.mrb[0].mxu0 %v833
        %v955 = vpop.f32.mrb[0].mxu0
        %v956 = vadd.f32 0.0, %v955
        %v957 = vpop.f32.mrb[0].mxu0
        %958 = vmatprep.mubr.f32.mxu0 %v866
        %959 = vmatmul.mubr.f32.gmra.mrb[0].mxu0 %v834
        %v960 = vpop.f32.mrb[0].mxu0
        %v961 = vadd.f32 0.0, %v960
        %v962 = vpop.f32.mrb[0].mxu0
        %963 = vmatprep.mubr.f32.mxu0 %v867
        %964 = vmatmul.mubr.f32.gmra.mrb[0].mxu0 %v835
        %v965 = vpop.f32.mrb[0].mxu0
        %v966 = vadd.f32 0.0, %v965
        %v967 = vpop.f32.mrb[0].mxu0
        %968 = vmatprep.mubr.f32.mxu0 %v868
        %969 = vmatmul.mubr.f32.gmra.mrb[0].mxu0 %v836
        %v970 = vpop.f32.mrb[0].mxu0
        %v971 = vadd.f32 0.0, %v970
        %v972 = vpop.f32.mrb[0].mxu0
        %973 = vmatprep.mubr.f32.mxu0 %v869
        %974 = vmatmul.mubr.f32.gmra.mrb[0].mxu0 %v837
        %v975 = vpop.f32.mrb[0].mxu0
        %v976 = vadd.f32 0.0, %v975
        %v977 = vpop.f32.mrb[0].mxu0
        %978 = vmatprep.mubr.f32.mxu0 %v870
        %979 = vmatmul.mubr.f32.gmra.mrb[0].mxu0 %v838
        %v980 = vpop.f32.mrb[0].mxu0
        %v981 = vadd.f32 0.0, %v980
        %v982 = vpop.f32.mrb[0].mxu0
        %983 = vmatprep.mubr.f32.mxu0 %v871
        %984 = vmatmul.mubr.f32.gmra.mrb[0].mxu0 %v839
        %v985 = vpop.f32.mrb[0].mxu0
        %v986 = vadd.f32 0.0, %v985
        %v987 = vpop.f32.mrb[0].mxu0
        %988 = vmatprep.mubr.f32.mxu0 %v872
        %989 = vmatmul.mubr.f32.gmra.mrb[0].mxu0 %v840
        %v990 = vpop.f32.mrb[0].mxu0
        %v991 = vadd.f32 0.0, %v990
        %v992 = vpop.f32.mrb[0].mxu0
        %993 = vmatprep.mubr.f32.mxu0 %v873
        %994 = vmatmul.mubr.f32.gmra.mrb[0].mxu0 %v841
        %v995 = vpop.f32.mrb[0].mxu0
        %v996 = vadd.f32 0.0, %v995
        %v997 = vpop.f32.mrb[0].mxu0
        %998 = vmatprep.mubr.f32.mxu0 %v874
        %999 = vmatmul.mubr.f32.gmra.mrb[0].mxu0 %v842
        %v1000 = vpop.f32.mrb[0].mxu0
        %v1001 = vadd.f32 0.0, %v1000
        %v1002 = vpop.f32.mrb[0].mxu0
        %1003 = vmatprep.mubr.f32.mxu0 %v875
        %1004 = vmatmul.mubr.f32.gmra.mrb[0].mxu0 %v843
        %v1005 = vpop.f32.mrb[0].mxu0
        %v1006 = vadd.f32 0.0, %v1005
        %v1007 = vpop.f32.mrb[0].mxu0
        %1008 = vmatprep.mubr.f32.mxu0 %v876
        %1009 = vmatmul.mubr.f32.gmra.mrb[0].mxu0 %v844
        %v1010 = vpop.f32.mrb[0].mxu0
        %v1011 = vadd.f32 0.0, %v1010
        %v1012 = vpop.f32.mrb[0].mxu0
        %1013 = vmatprep.mubr.f32.mxu0 %v877
        %1014 = vmatmul.mubr.f32.gmra.mrb[0].mxu0 %v845
        %v1015 = vpop.f32.mrb[0].mxu0
        %v1016 = vadd.f32 0.0, %v1015
        %v1017 = vpop.f32.mrb[0].mxu0
        %1018 = vmatprep.mubr.f32.mxu0 %v878
        %1019 = vmatmul.mubr.f32.gmra.mrb[0].mxu0 %v846
        %v1020 = vpop.f32.mrb[0].mxu0
        %v1021 = vadd.f32 0.0, %v1020
        %v1022 = vpop.f32.mrb[0].mxu0
        %1023 = vdwg.mxu0
        %v1024 = vmul.f32 %v946, 0.999999
        %v1025 = vmul.f32 %v951, 0.999999
        %v1026 = vmul.f32 %v956, 0.999999
        %v1027 = vmul.f32 %v961, 0.999999
        %v1028 = vmul.f32 %v966, 0.999999
        %v1029 = vmul.f32 %v971, 0.999999
        %v1030 = vmul.f32 %v976, 0.999999
        %v1031 = vmul.f32 %v981, 0.999999
        %v1032 = vmul.f32 %v986, 0.999999
        %v1033 = vmul.f32 %v991, 0.999999
        %v1034 = vmul.f32 %v996, 0.999999
        %v1035 = vmul.f32 %v1001, 0.999999
        %v1036 = vmul.f32 %v1006, 0.999999
        %v1037 = vmul.f32 %v1011, 0.999999
        %v1038 = vmul.f32 %v1016, 0.999999
        %v1039 = vmul.f32 %v1021, 0.999999
        %1040 = vst.msk [vmem:[%s208] sm:$0xff] %vm253, %v1024
        %1041 = vst.msk [vmem:[%s208 + $0x8] sm:$0xff] %vm253, %v1025
        %1042 = vst.msk [vmem:[%s208 + $0x10] sm:$0xff] %vm253, %v1026
        %1043 = vst.msk [vmem:[%s208 + $0x18] sm:$0xff] %vm253, %v1027
        %1044 = vst.msk [vmem:[%s208 + $0x20] sm:$0xff] %vm253, %v1028
        %1045 = vst.msk [vmem:[%s208 + $0x28] sm:$0xff] %vm253, %v1029
        %1046 = vst.msk [vmem:[%s208 + $0x30] sm:$0xff] %vm253, %v1030
        %1047 = vst.msk [vmem:[%s208 + $0x38] sm:$0xff] %vm253, %v1031
        %1048 = vst.msk [vmem:[%s208 + $0x40] sm:$0xff] %vm253, %v1032
        %1049 = vst.msk [vmem:[%s208 + $0x48] sm:$0xff] %vm253, %v1033
        %1050 = vst.msk [vmem:[%s208 + $0x50] sm:$0xff] %vm253, %v1034
        %1051 = vst.msk [vmem:[%s208 + $0x58] sm:$0xff] %vm253, %v1035
        %1052 = vst.msk [vmem:[%s208 + $0x60] sm:$0xff] %vm253, %v1036
        %1053 = vst.msk [vmem:[%s208 + $0x68] sm:$0xff] %vm253, %v1037
        %1054 = vst.msk [vmem:[%s208 + $0x70] sm:$0xff] %vm253, %v1038
        %1055 = vst.msk [vmem:[%s208 + $0x78] sm:$0xff] %vm253, %v1039
        %p1056 = scmp.lt.s32.totalorder %s19, 1
        %s1057 = scalar_select %p1056, %s19, 1
        %s1058 = smul.addr %s1057, 16
        %s1059 = smul.addr %s1058, 8
        %s1060 = scalar_lea.vmem %s3, %s1059
        %s1061 = sand.u32 %s121, 1
        %s1062 = scalar_lea.sflag [#allocation3], %s1061
        %s1063 = sand.u32 %s121, 1
        %s1064 = smul.addr %s1063, 256
        %s1065 = scalar_lea.vmem [#allocation2], %s1064
        // Predicated region
        $region33: #{tpu_custom_call.1} parent=31 // pred_check
          %p1066 = pneg %p105
        $region34: #{tpu_custom_call.1} parent=31 // pred_check_branch
          %1068 = sbr.rel (%p1066) target = $region36
        $region35: #{tpu_custom_call.1} parent=31 // pred_region
          _
        $region36: #{tpu_custom_call.1} parent=31 // pred_fallthru
          _
        // Predicated region
        $region37: #{tpu_custom_call.1} parent=31 // pred_check
          %p1069 = pneg %p131
        $region38: #{tpu_custom_call.1} parent=31 // pred_check_branch
          %1071 = sbr.rel (%p1069) target = $region40
        $region39: #{tpu_custom_call.1} parent=31 // pred_region
          %s1073 = ssub.s32 4096, 4096
          %1074 = vsyncadd %s1062, %s1073
          %s1075 = smul.addr %s19, 32
          %s1076 = smul.addr %s1075, 128
          %s1077 = scalar_lea.hbm %s4, %s1076
          %s1078 = sshll.u32 %s1065, 4
          %s1079 = int_to_ptr.vmem [resolvable:$true] %s1078
          %1084 = dma.vmem_to_hbm [thread:$0]  %s1079, 4096, %s1077, %s1062, 128, 128, 8
        $region40: #{tpu_custom_call.1} parent=31 // pred_fallthru
          _
      $region32: #{tpu_custom_call.1} parent=5 // pred_fallthru
        _
      %p1085 = scmp.le.s32.totalorder 2, %s14
      // Predicated region
      $region41: #{tpu_custom_call.1} parent=5 // pred_check
        %p1086 = pneg %p1085
      $region42: #{tpu_custom_call.1} parent=5 // pred_check_branch
        %1088 = sbr.rel (%p1086) target = $region44
      $region43: #{tpu_custom_call.1} parent=5 // pred_region
        %s1089 = ssub.s32 %s14, 2
        // Predicated region
        $region45: #{tpu_custom_call.1} parent=43 // pred_check
          %p1090 = pneg %p111
        $region46: #{tpu_custom_call.1} parent=43 // pred_check_branch
          %1092 = sbr.rel (%p1090) target = $region48
        $region47: #{tpu_custom_call.1} parent=43 // pred_region
          %p1093 = scmp.lt.s32.totalorder %s20, 1
          %s1094 = scalar_select %p1093, %s20, 1
          %s1095 = smul.addr %s1094, 16
          %s1096 = smul.addr %s1095, 8
          %s1097 = scalar_lea.vmem %s3, %s1096
        $region48: #{tpu_custom_call.1} parent=43 // pred_fallthru
          _
        // Predicated region
        $region49: #{tpu_custom_call.1} parent=43 // pred_check
          %p1098 = pneg %p137
        $region50: #{tpu_custom_call.1} parent=43 // pred_check_branch
          %1100 = sbr.rel (%p1098) target = $region52
        $region51: #{tpu_custom_call.1} parent=43 // pred_region
          %s1101 = sand.u32 %s122, 1
          %s1102 = scalar_lea.sflag [#allocation3], %s1101
          %s1103 = sand.u32 %s122, 1
          %s1104 = smul.addr %s1103, 256
          %s1105 = scalar_lea.vmem [#allocation2], %s1104
          %1106 = dma.done %s1102, 4096
        $region52: #{tpu_custom_call.1} parent=43 // pred_fallthru
          _
      $region44: #{tpu_custom_call.1} parent=5 // pred_fallthru
        _
    $region6: #{tpu_custom_call.1} parent=1 // loop_footer
      %s18 = sadd.s32 1, %s14
    $region7: #{tpu_custom_call.1} parent=1 // loop_footer_branch
      %13 = sbr.rel target = $region3
    $region8: #{tpu_custom_call.1} parent=1 // loop_exit
      _
    %1107 = vsyncpa [#allocation3], 1
    %s1108 = scalar_lea.sflag [#allocation3], 1
    %1109 = vsyncpa %s1108, 1

</llo_original>
